<compile_context>
chip_gen: v7x
topology: tpu7x:2x2x1
jax: 0.10.0
libtpu: 0.0.40
codegen_flags: <defaults>
</compile_context>

<pallas_src>
import jax
import jax.numpy as jnp
from jax.experimental import pallas as pl
from jax.experimental.pallas import tpu as pltpu

_SUBLANE = 8
_MAX_DMA_CHUNKS_PER_TABLE = 4  # a few concurrent DMAs keep the copy engines
_MIN_CHUNK_ROWS = 2048         # busy on big tables; small tables go as a
                               # single whole-array HBM->HBM DMA.


def _row_chunks(rows):
    """Static (start, size) row chunks with sublane(8)-aligned boundaries."""
    if rows <= _MIN_CHUNK_ROWS:
        return [(0, rows)]
    k = min(_MAX_DMA_CHUNKS_PER_TABLE, max(1, rows // _MIN_CHUNK_ROWS))
    chunk = -(-rows // k)                                   # cdiv
    chunk = ((chunk + _SUBLANE - 1) // _SUBLANE) * _SUBLANE  # align to 8
    bounds, start = [], 0
    while start < rows:
        size = min(chunk, rows - start)
        bounds.append((start, size))
        start += size
    return bounds


def _make_fused_hbm_copy_kernel(shapes, chunk_plans):
    """Kernel factory: n HBM inputs, n HBM outputs, one DMA sem per chunk."""
    n = len(shapes)

    def kernel(*args):
        srcs = args[:n]
        dsts = args[n:2 * n]
        sem = args[2 * n]
        copies = []
        s = 0
        for t in range(n):
            rows = shapes[t][0]
            plan = chunk_plans[t]
            for (start, size) in plan:
                if len(plan) == 1 and start == 0 and size == rows:
                    # whole-array DMA (no slicing)
                    src_view, dst_view = srcs[t], dsts[t]
                else:
                    # static row-slice views (zero runtime cost)
                    src_view = srcs[t].at[start:start + size]
                    dst_view = dsts[t].at[start:start + size]
                copies.append(
                    pltpu.make_async_copy(src_view, dst_view, sem.at[s]))
                s += 1
        # Start every DMA first so they overlap, then wait on all of them.
        for cp in copies:
            cp.start()
        for cp in copies:
            cp.wait()

    return kernel


def materialize_tables(tables, *, donate=False):
    """Materialize fresh HBM copies of the given 2-D tables in ONE pallas_call.

    donate=True means the caller is fine with the output aliasing the input,
    in which case running any kernel is pure waste — return the inputs as-is.
    """
    tables = tuple(tables)
    if donate:
        return tables

    shapes = tuple(t.shape for t in tables)
    chunk_plans = [_row_chunks(s[0]) for s in shapes]
    total_chunks = sum(len(p) for p in chunk_plans)
    total_bytes = sum(int(t.size) * t.dtype.itemsize for t in tables)

    outs = pl.pallas_call(
        _make_fused_hbm_copy_kernel(shapes, chunk_plans),
        out_shape=tuple(jax.ShapeDtypeStruct(t.shape, t.dtype) for t in tables),
        # Raw HBM refs in and out: the copy is driven entirely by the DMA
        # engines, never staged through VMEM / vregs.
        in_specs=[pl.BlockSpec(memory_space=pl.ANY) for _ in tables],
        out_specs=tuple(pl.BlockSpec(memory_space=pl.ANY) for _ in tables),
        scratch_shapes=[pltpu.SemaphoreType.DMA((total_chunks,))],
        cost_estimate=pl.CostEstimate(
            flops=0, transcendentals=0, bytes_accessed=2 * total_bytes),
    )(*tables)
    return outs


class UltraGCNPallas:
    """Minimal JAX/Pallas port of UltraGCN's forward pass.

    Only the parameters forward() touches are created:
      user_embeds : [n_users, embed_dim]
      item_embeds : [n_items, embed_dim]
    Both initialized ~ Normal(0, initial_weight) deterministically.
    """

    def __init__(self, n_users, n_items, embed_dim, initial_weight=1e-4, seed=0):
        key = jax.random.PRNGKey(seed)
        ku, ki = jax.random.split(key)
        self.user_embeds = (
            jax.random.normal(ku, (n_users, embed_dim), dtype=jnp.float32)
            * initial_weight)
        self.item_embeds = (
            jax.random.normal(ki, (n_items, embed_dim), dtype=jnp.float32)
            * initial_weight)

    def forward(self, adj=None, materialize=False, donate=False):
        # adj is unused by the reference forward as well.
        if not materialize:
            # Fastest path (matches reference semantics exactly): forward is
            # an identity, so return the tables with zero HBM traffic.
            return self.user_embeds, self.item_embeds
        # Materializing path: both tables copied in ONE fused HBM->HBM DMA
        # kernel launch (or skipped entirely when donating).
        return materialize_tables((self.user_embeds, self.item_embeds),
                                  donate=donate)


if __name__ == "__main__":
    # Small shapes consistent with the module: users/items tables, embed_size.
    n_users, n_items, embed_dim = 128, 256, 64
    model = UltraGCNPallas(n_users, n_items, embed_dim,
                           initial_weight=1e-4, seed=0)

    adj = None  # ignored by forward()

    # Default (zero-copy) forward.
    u_fast, i_fast = model.forward(adj)
    assert u_fast.shape == (n_users, embed_dim)
    assert i_fast.shape == (n_items, embed_dim)

    # Donated "materialize": the kernel is skipped entirely (aliased copy is a
    # semantic no-op), so we get the original buffers back.
    u_don, i_don = model.forward(adj, materialize=True, donate=True)
    assert u_don is model.user_embeds and i_don is model.item_embeds

    # Materializing forward: ONE fused pallas_call copies both tables HBM->HBM.
    u_out, i_out = model.forward(adj, materialize=True)
    u_out = jax.block_until_ready(u_out)
    i_out = jax.block_until_ready(i_out)

    assert u_out.shape == (n_users, embed_dim)
    assert i_out.shape == (n_items, embed_dim)
    # Bitwise equality (a copy must not change dtype/values).
    assert jnp.array_equal(u_out, model.user_embeds)
    assert jnp.array_equal(i_out, model.item_embeds)

    # Exercise the non-8-divisible row count path (whole-array DMA).
    odd = jax.random.normal(jax.random.PRNGKey(1), (203, embed_dim),
                            dtype=jnp.float32)
    (odd_out,) = materialize_tables((odd,))
    odd_out = jax.block_until_ready(odd_out)
    assert odd_out.shape == odd.shape
    assert jnp.array_equal(odd_out, odd)

    # Exercise the multi-chunk concurrent-DMA path (rows > _MIN_CHUNK_ROWS).
    big = jax.random.normal(jax.random.PRNGKey(2), (4100, embed_dim),
                            dtype=jnp.float32)
    (big_out,) = materialize_tables((big,))
    big_out = jax.block_until_ready(big_out)
    assert big_out.shape == big.shape
    assert jnp.array_equal(big_out, big)

    print("KERNEL_OK")
</pallas_src>

<mosaic_0001>
module attributes {stable_mosaic.version = 11 : i64} {
  func.func @kernel(%arg0: memref<128x64xf32, #tpu.memory_space<any>>, %arg1: memref<256x64xf32, #tpu.memory_space<any>>, %arg2: memref<128x64xf32, #tpu.memory_space<any>>, %arg3: memref<256x64xf32, #tpu.memory_space<any>>, %arg4: memref<2x!tpu.dma_semaphore, #tpu.memory_space<semaphore_mem>>) attributes {dimension_semantics = [], scalar_prefetch = 0 : i64, scratch_operands = 1 : i64, tpu.core_type = #tpu.core_type<tc>} {
    %c0_i32 = arith.constant 0 : i32
    %0 = tpu.memref_slice %arg4[%c0_i32] : memref<2x!tpu.dma_semaphore, #tpu.memory_space<semaphore_mem>> -> memref<1x!tpu.dma_semaphore, #tpu.memory_space<semaphore_mem>>
    %1 = tpu.memref_squeeze %0 : memref<1x!tpu.dma_semaphore, #tpu.memory_space<semaphore_mem>> -> memref<!tpu.dma_semaphore, #tpu.memory_space<semaphore_mem>>
    tpu.enqueue_dma source(%arg0 : memref<128x64xf32, #tpu.memory_space<any>>) target(%arg2 : memref<128x64xf32, #tpu.memory_space<any>>) target_semaphore(%1 : memref<!tpu.dma_semaphore, #tpu.memory_space<semaphore_mem>>)
    %c1_i32 = arith.constant 1 : i32
    %2 = tpu.memref_slice %arg4[%c1_i32] : memref<2x!tpu.dma_semaphore, #tpu.memory_space<semaphore_mem>> -> memref<1x!tpu.dma_semaphore, #tpu.memory_space<semaphore_mem>>
    %3 = tpu.memref_squeeze %2 : memref<1x!tpu.dma_semaphore, #tpu.memory_space<semaphore_mem>> -> memref<!tpu.dma_semaphore, #tpu.memory_space<semaphore_mem>>
    tpu.enqueue_dma source(%arg1 : memref<256x64xf32, #tpu.memory_space<any>>) target(%arg3 : memref<256x64xf32, #tpu.memory_space<any>>) target_semaphore(%3 : memref<!tpu.dma_semaphore, #tpu.memory_space<semaphore_mem>>)
    %c0_i32_0 = arith.constant 0 : i32
    %4 = tpu.memref_slice %arg4[%c0_i32_0] : memref<2x!tpu.dma_semaphore, #tpu.memory_space<semaphore_mem>> -> memref<1x!tpu.dma_semaphore, #tpu.memory_space<semaphore_mem>>
    %5 = tpu.memref_squeeze %4 : memref<1x!tpu.dma_semaphore, #tpu.memory_space<semaphore_mem>> -> memref<!tpu.dma_semaphore, #tpu.memory_space<semaphore_mem>>
    tpu.wait_dma2 semaphore(%5 : memref<!tpu.dma_semaphore, #tpu.memory_space<semaphore_mem>>) src(%arg0 : memref<128x64xf32, #tpu.memory_space<any>>) dst(%arg2 : memref<128x64xf32, #tpu.memory_space<any>>)
    %c1_i32_1 = arith.constant 1 : i32
    %6 = tpu.memref_slice %arg4[%c1_i32_1] : memref<2x!tpu.dma_semaphore, #tpu.memory_space<semaphore_mem>> -> memref<1x!tpu.dma_semaphore, #tpu.memory_space<semaphore_mem>>
    %7 = tpu.memref_squeeze %6 : memref<1x!tpu.dma_semaphore, #tpu.memory_space<semaphore_mem>> -> memref<!tpu.dma_semaphore, #tpu.memory_space<semaphore_mem>>
    tpu.wait_dma2 semaphore(%7 : memref<!tpu.dma_semaphore, #tpu.memory_space<semaphore_mem>>) src(%arg1 : memref<256x64xf32, #tpu.memory_space<any>>) dst(%arg3 : memref<256x64xf32, #tpu.memory_space<any>>)
    return
  }
}

</mosaic_0001>

<llo_original>
// kernel: tpu_custom_call.1
$region0: #{tpu_custom_call.1}
  #allocation0 [shape = 'u32[]', space=smem, size = 0x4, offset = 0x4, fixed_abs, tag = 'smem constant byte address 0x4 - core index']
  #allocation1 [shape = 'u32[144,128]{1,0:T(1,128)}', space=vmem, size = 0x12000, scoped, tag = 'internal scratch']
  #allocation2 [shape = 's32[2]{0}', space=sflag, size = 0x8, scoped, tag = 'scratch operand']
  #allocation3 [shape = 's32[]', space=sflag, size = 0x4, offset = 0, fixed_abs, tag = 'sflag constant byte address 0x0 - dummy sync flag']
  #allocation4 [shape = 's32[]', space=sflag, size = 0x4, offset = 0, fixed_abs, tag = 'sflag constant byte address 0x0 - dummy sync flag']
  %s0 = inlined_call_operand.vmem [shape: f32[128,64], index: 0, kind: input, shape index: {}]
  %s1 = inlined_call_operand.vmem [shape: f32[256,64], index: 1, kind: input, shape index: {}]
  %s2 = inlined_call_operand.vmem [shape: f32[128,64], index: 2, kind: output, shape index: {0}]
  %s3 = inlined_call_operand.vmem [shape: f32[256,64], index: 3, kind: output, shape index: {1}]
  %4 = xla_tuple %s2, %s3
  %s5 = sld [smem:[#allocation0]]
  $region70: #{tpu_custom_call.1} parent=0
    _
  %s7 = ssub.s32 1, %s5
  %s8 = scalar_select 0, %s7, %s5
  %p10 = scmp.lt.u32.totalorder 128, 8
  %p11 = pneg %p10
  // Predicated region
  $region2: #{tpu_custom_call.1} parent=0 // pred_check
    _
  $region3: #{tpu_custom_call.1} parent=0 // pred_check_branch
    %13 = sbr.rel (%p10) target = $region5
  $region4: #{tpu_custom_call.1} parent=0 // pred_region
    %s28 = sand.u32 128, 7
    %p29 = scmp.eq.s32.totalorder %s28, 0
    // Predicated region
    $region17: #{tpu_custom_call.1} parent=4 // pred_check
      %p30 = pneg %p29
    $region18: #{tpu_custom_call.1} parent=4 // pred_check_branch
      %32 = sbr.rel (%p30) target = $region20
    $region19: #{tpu_custom_call.1} parent=4 // pred_region
      loop: start=0, step=1, limit=1
      $region21: #{tpu_custom_call.1} parent=19 // loop_pre_header
        _
      $region22: #{tpu_custom_call.1} parent=19 // loop_header
        %s34 = sphi 0, %s38
        %p35 = scmp.ge.s32.totalorder %s34, 1
        %s39 = sphi %s0, %s0
        %s40 = sphi %s2, %s2
      $region23: #{tpu_custom_call.1} parent=19 // loop_header_branch
        %37 = sbr.rel (%p35) target = $region27
      $region24: #{tpu_custom_call.1} parent=19 // loop_body
        %v41 = vld [vmem:[%s39] sm:$0xff]
        %42 = vst [vmem:[%s40] sm:$0xff] %v41
        %v43 = vld [vmem:[%s39 + $0x8] sm:$0xff]
        %44 = vst [vmem:[%s40 + $0x8] sm:$0xff] %v43
        %v45 = vld [vmem:[%s39 + $0x10] sm:$0xff]
        %46 = vst [vmem:[%s40 + $0x10] sm:$0xff] %v45
        %v47 = vld [vmem:[%s39 + $0x18] sm:$0xff]
        %48 = vst [vmem:[%s40 + $0x18] sm:$0xff] %v47
        %v49 = vld [vmem:[%s39 + $0x20] sm:$0xff]
        %50 = vst [vmem:[%s40 + $0x20] sm:$0xff] %v49
        %v51 = vld [vmem:[%s39 + $0x28] sm:$0xff]
        %52 = vst [vmem:[%s40 + $0x28] sm:$0xff] %v51
        %v53 = vld [vmem:[%s39 + $0x30] sm:$0xff]
        %54 = vst [vmem:[%s40 + $0x30] sm:$0xff] %v53
        %v55 = vld [vmem:[%s39 + $0x38] sm:$0xff]
        %56 = vst [vmem:[%s40 + $0x38] sm:$0xff] %v55
        %v57 = vld [vmem:[%s39 + $0x40] sm:$0xff]
        %58 = vst [vmem:[%s40 + $0x40] sm:$0xff] %v57
        %v59 = vld [vmem:[%s39 + $0x48] sm:$0xff]
        %60 = vst [vmem:[%s40 + $0x48] sm:$0xff] %v59
        %v61 = vld [vmem:[%s39 + $0x50] sm:$0xff]
        %62 = vst [vmem:[%s40 + $0x50] sm:$0xff] %v61
        %v63 = vld [vmem:[%s39 + $0x58] sm:$0xff]
        %64 = vst [vmem:[%s40 + $0x58] sm:$0xff] %v63
        %v65 = vld [vmem:[%s39 + $0x60] sm:$0xff]
        %66 = vst [vmem:[%s40 + $0x60] sm:$0xff] %v65
        %v67 = vld [vmem:[%s39 + $0x68] sm:$0xff]
        %68 = vst [vmem:[%s40 + $0x68] sm:$0xff] %v67
        %v69 = vld [vmem:[%s39 + $0x70] sm:$0xff]
        %70 = vst [vmem:[%s40 + $0x70] sm:$0xff] %v69
        %v71 = vld [vmem:[%s39 + $0x78] sm:$0xff]
        %72 = vst [vmem:[%s40 + $0x78] sm:$0xff] %v71
      $region25: #{tpu_custom_call.1} parent=19 // loop_footer
        %s38 = sadd.s32 1, %s34
      $region26: #{tpu_custom_call.1} parent=19 // loop_footer_branch
        %33 = sbr.rel target = $region22
      $region27: #{tpu_custom_call.1} parent=19 // loop_exit
        _
    $region20: #{tpu_custom_call.1} parent=4 // pred_fallthru
      _
    %p73 = pneg %p29
    // Predicated region
    $region28: #{tpu_custom_call.1} parent=4 // pred_check
      _
    $region29: #{tpu_custom_call.1} parent=4 // pred_check_branch
      %75 = sbr.rel (%p29) target = $region31
    $region30: #{tpu_custom_call.1} parent=4 // pred_region
      %s76 = sand.u32 128, 7
    $region31: #{tpu_custom_call.1} parent=4 // pred_fallthru
      _
  $region5: #{tpu_custom_call.1} parent=0 // pred_fallthru
    _
  // Predicated region
  $region6: #{tpu_custom_call.1} parent=0 // pred_check
    %p14 = pneg %p10
  $region7: #{tpu_custom_call.1} parent=0 // pred_check_branch
    %16 = sbr.rel (%p14) target = $region9
  $region8: #{tpu_custom_call.1} parent=0 // pred_region
    %s17 = sshllo.u32 0, 128
    loop: start=0, step=1, limit=1
    $region10: #{tpu_custom_call.1} parent=8 // loop_pre_header
      _
    $region11: #{tpu_custom_call.1} parent=8 // loop_header
      %s19 = sphi 0, %s23
      %p20 = scmp.ge.s32.totalorder %s19, 1
      %s24 = sphi %s0, %s0
      %s25 = sphi %s2, %s2
    $region12: #{tpu_custom_call.1} parent=8 // loop_header_branch
      %22 = sbr.rel (%p20) target = $region16
    $region13: #{tpu_custom_call.1} parent=8 // loop_body
      %v26 = vld [vmem:[%s24] sm:%s17]
      %27 = vst [vmem:[%s25] sm:%s17] %v26
    $region14: #{tpu_custom_call.1} parent=8 // loop_footer
      %s23 = sadd.s32 1, %s19
    $region15: #{tpu_custom_call.1} parent=8 // loop_footer_branch
      %18 = sbr.rel target = $region11
    $region16: #{tpu_custom_call.1} parent=8 // loop_exit
      _
  $region9: #{tpu_custom_call.1} parent=0 // pred_fallthru
    _
  // Predicated region
  $region32: #{tpu_custom_call.1} parent=0 // pred_check
    _
  $region33: #{tpu_custom_call.1} parent=0 // pred_check_branch
    %79 = sbr.rel (0) target = $region35
  $region34: #{tpu_custom_call.1} parent=0 // pred_region
    %80 = vsyncadd [#allocation2], 2048
  $region35: #{tpu_custom_call.1} parent=0 // pred_fallthru
    _
  %s81 = scalar_lea.sflag [#allocation2], 1
  %p83 = scmp.lt.u32.totalorder 256, 8
  %p84 = pneg %p83
  // Predicated region
  $region36: #{tpu_custom_call.1} parent=0 // pred_check
    _
  $region37: #{tpu_custom_call.1} parent=0 // pred_check_branch
    %86 = sbr.rel (%p83) target = $region39
  $region38: #{tpu_custom_call.1} parent=0 // pred_region
    %s101 = sand.u32 256, 7
    %p102 = scmp.eq.s32.totalorder %s101, 0
    // Predicated region
    $region51: #{tpu_custom_call.1} parent=38 // pred_check
      %p103 = pneg %p102
    $region52: #{tpu_custom_call.1} parent=38 // pred_check_branch
      %105 = sbr.rel (%p103) target = $region54
    $region53: #{tpu_custom_call.1} parent=38 // pred_region
      loop: start=0, step=1, limit=1
      $region55: #{tpu_custom_call.1} parent=53 // loop_pre_header
        _
      $region56: #{tpu_custom_call.1} parent=53 // loop_header
        %s107 = sphi 0, %s111
        %p108 = scmp.ge.s32.totalorder %s107, 1
        %s112 = sphi %s1, %s1
        %s113 = sphi %s3, %s3
      $region57: #{tpu_custom_call.1} parent=53 // loop_header_branch
        %110 = sbr.rel (%p108) target = $region61
      $region58: #{tpu_custom_call.1} parent=53 // loop_body
        %v114 = vld [vmem:[%s112] sm:$0xff]
        %115 = vst [vmem:[%s113] sm:$0xff] %v114
        %v116 = vld [vmem:[%s112 + $0x8] sm:$0xff]
        %117 = vst [vmem:[%s113 + $0x8] sm:$0xff] %v116
        %v118 = vld [vmem:[%s112 + $0x10] sm:$0xff]
        %119 = vst [vmem:[%s113 + $0x10] sm:$0xff] %v118
        %v120 = vld [vmem:[%s112 + $0x18] sm:$0xff]
        %121 = vst [vmem:[%s113 + $0x18] sm:$0xff] %v120
        %v122 = vld [vmem:[%s112 + $0x20] sm:$0xff]
        %123 = vst [vmem:[%s113 + $0x20] sm:$0xff] %v122
        %v124 = vld [vmem:[%s112 + $0x28] sm:$0xff]
        %125 = vst [vmem:[%s113 + $0x28] sm:$0xff] %v124
        %v126 = vld [vmem:[%s112 + $0x30] sm:$0xff]
        %127 = vst [vmem:[%s113 + $0x30] sm:$0xff] %v126
        %v128 = vld [vmem:[%s112 + $0x38] sm:$0xff]
        %129 = vst [vmem:[%s113 + $0x38] sm:$0xff] %v128
        %v130 = vld [vmem:[%s112 + $0x40] sm:$0xff]
        %131 = vst [vmem:[%s113 + $0x40] sm:$0xff] %v130
        %v132 = vld [vmem:[%s112 + $0x48] sm:$0xff]
        %133 = vst [vmem:[%s113 + $0x48] sm:$0xff] %v132
        %v134 = vld [vmem:[%s112 + $0x50] sm:$0xff]
        %135 = vst [vmem:[%s113 + $0x50] sm:$0xff] %v134
        %v136 = vld [vmem:[%s112 + $0x58] sm:$0xff]
        %137 = vst [vmem:[%s113 + $0x58] sm:$0xff] %v136
        %v138 = vld [vmem:[%s112 + $0x60] sm:$0xff]
        %139 = vst [vmem:[%s113 + $0x60] sm:$0xff] %v138
        %v140 = vld [vmem:[%s112 + $0x68] sm:$0xff]
        %141 = vst [vmem:[%s113 + $0x68] sm:$0xff] %v140
        %v142 = vld [vmem:[%s112 + $0x70] sm:$0xff]
        %143 = vst [vmem:[%s113 + $0x70] sm:$0xff] %v142
        %v144 = vld [vmem:[%s112 + $0x78] sm:$0xff]
        %145 = vst [vmem:[%s113 + $0x78] sm:$0xff] %v144
        %v146 = vld [vmem:[%s112 + $0x80] sm:$0xff]
        %147 = vst [vmem:[%s113 + $0x80] sm:$0xff] %v146
        %v148 = vld [vmem:[%s112 + $0x88] sm:$0xff]
        %149 = vst [vmem:[%s113 + $0x88] sm:$0xff] %v148
        %v150 = vld [vmem:[%s112 + $0x90] sm:$0xff]
        %151 = vst [vmem:[%s113 + $0x90] sm:$0xff] %v150
        %v152 = vld [vmem:[%s112 + $0x98] sm:$0xff]
        %153 = vst [vmem:[%s113 + $0x98] sm:$0xff] %v152
        %v154 = vld [vmem:[%s112 + $0xa0] sm:$0xff]
        %155 = vst [vmem:[%s113 + $0xa0] sm:$0xff] %v154
        %v156 = vld [vmem:[%s112 + $0xa8] sm:$0xff]
        %157 = vst [vmem:[%s113 + $0xa8] sm:$0xff] %v156
        %v158 = vld [vmem:[%s112 + $0xb0] sm:$0xff]
        %159 = vst [vmem:[%s113 + $0xb0] sm:$0xff] %v158
        %v160 = vld [vmem:[%s112 + $0xb8] sm:$0xff]
        %161 = vst [vmem:[%s113 + $0xb8] sm:$0xff] %v160
        %v162 = vld [vmem:[%s112 + $0xc0] sm:$0xff]
        %163 = vst [vmem:[%s113 + $0xc0] sm:$0xff] %v162
        %v164 = vld [vmem:[%s112 + $0xc8] sm:$0xff]
        %165 = vst [vmem:[%s113 + $0xc8] sm:$0xff] %v164
        %v166 = vld [vmem:[%s112 + $0xd0] sm:$0xff]
        %167 = vst [vmem:[%s113 + $0xd0] sm:$0xff] %v166
        %v168 = vld [vmem:[%s112 + $0xd8] sm:$0xff]
        %169 = vst [vmem:[%s113 + $0xd8] sm:$0xff] %v168
        %v170 = vld [vmem:[%s112 + $0xe0] sm:$0xff]
        %171 = vst [vmem:[%s113 + $0xe0] sm:$0xff] %v170
        %v172 = vld [vmem:[%s112 + $0xe8] sm:$0xff]
        %173 = vst [vmem:[%s113 + $0xe8] sm:$0xff] %v172
        %v174 = vld [vmem:[%s112 + $0xf0] sm:$0xff]
        %175 = vst [vmem:[%s113 + $0xf0] sm:$0xff] %v174
        %v176 = vld [vmem:[%s112 + $0xf8] sm:$0xff]
        %177 = vst [vmem:[%s113 + $0xf8] sm:$0xff] %v176
      $region59: #{tpu_custom_call.1} parent=53 // loop_footer
        %s111 = sadd.s32 1, %s107
      $region60: #{tpu_custom_call.1} parent=53 // loop_footer_branch
        %106 = sbr.rel target = $region56
      $region61: #{tpu_custom_call.1} parent=53 // loop_exit
        _
    $region54: #{tpu_custom_call.1} parent=38 // pred_fallthru
      _
    %p178 = pneg %p102
    // Predicated region
    $region62: #{tpu_custom_call.1} parent=38 // pred_check
      _
    $region63: #{tpu_custom_call.1} parent=38 // pred_check_branch
      %180 = sbr.rel (%p102) target = $region65
    $region64: #{tpu_custom_call.1} parent=38 // pred_region
      %s181 = sand.u32 256, 7
    $region65: #{tpu_custom_call.1} parent=38 // pred_fallthru
      _
  $region39: #{tpu_custom_call.1} parent=0 // pred_fallthru
    _
  // Predicated region
  $region40: #{tpu_custom_call.1} parent=0 // pred_check
    %p87 = pneg %p83
  $region41: #{tpu_custom_call.1} parent=0 // pred_check_branch
    %89 = sbr.rel (%p87) target = $region43
  $region42: #{tpu_custom_call.1} parent=0 // pred_region
    %s90 = sshllo.u32 0, 256
    loop: start=0, step=1, limit=1
    $region44: #{tpu_custom_call.1} parent=42 // loop_pre_header
      _
    $region45: #{tpu_custom_call.1} parent=42 // loop_header
      %s92 = sphi 0, %s96
      %p93 = scmp.ge.s32.totalorder %s92, 1
      %s97 = sphi %s1, %s1
      %s98 = sphi %s3, %s3
    $region46: #{tpu_custom_call.1} parent=42 // loop_header_branch
      %95 = sbr.rel (%p93) target = $region50
    $region47: #{tpu_custom_call.1} parent=42 // loop_body
      %v99 = vld [vmem:[%s97] sm:%s90]
      %100 = vst [vmem:[%s98] sm:%s90] %v99
    $region48: #{tpu_custom_call.1} parent=42 // loop_footer
      %s96 = sadd.s32 1, %s92
    $region49: #{tpu_custom_call.1} parent=42 // loop_footer_branch
      %91 = sbr.rel target = $region45
    $region50: #{tpu_custom_call.1} parent=42 // loop_exit
      _
  $region43: #{tpu_custom_call.1} parent=0 // pred_fallthru
    _
  // Predicated region
  $region66: #{tpu_custom_call.1} parent=0 // pred_check
    _
  $region67: #{tpu_custom_call.1} parent=0 // pred_check_branch
    %184 = sbr.rel (0) target = $region69
  $region68: #{tpu_custom_call.1} parent=0 // pred_region
    %185 = vsyncadd %s81, 4096
  $region69: #{tpu_custom_call.1} parent=0 // pred_fallthru
    _
  %s186 = smul.u32 128, 1
  %s187 = sshll.u32 %s186, 4
  %188 = dma.done [#allocation2], %s187
  %s189 = smul.u32 256, 1
  %s190 = sshll.u32 %s189, 4
  %191 = dma.done %s81, %s190
  %192 = vsyncmov [#allocation2]
  %s193 = vpop.sfrf %192
  %p194 = scmp.eq.s32.totalorder %s193, 0
  %p195 = pneg %p194
  %197 = shalt.err (%p195)
  %s198 = scalar_lea.sflag [#allocation2], 1
  %199 = vsyncmov %s198
  %s200 = vpop.sfrf %199
  %p201 = scmp.eq.s32.totalorder %s200, 0
  %p202 = pneg %p201
  %204 = shalt.err (%p202)

</llo_original>
